<compile_context>
chip_gen: v7x
topology: tpu7x:2x2x1
jax: 0.10.0
libtpu: 0.0.40
codegen_flags: <defaults>
</compile_context>

<pallas_src>
import functools

import jax
import jax.numpy as jnp
import numpy as np
from jax import lax
from jax.experimental import pallas as pl
from jax.experimental.pallas import tpu as pltpu

_SLOPE = 0.01     # InPlaceABNSync default leaky_relu slope
_TILE = 128       # query-row / key-row tile (8,128-aligned; keep <=256 for v7x;
                  # can be swept up to 256/512 on v5e/v6e)
_LANE = 128


def _leaky(z):
    return jnp.where(z >= 0, z, _SLOPE * z)


def _round_up(n, m):
    return ((n + m - 1) // m) * m


def _vmem_limit_bytes():
    # v5e/v6e: 128 MiB physical -> ~96 MiB; v7x: 64 MiB/TC -> ~48 MiB
    # (headroom for compiler-internal scratch).
    try:
        cap = int(pltpu.get_tpu_info().vmem_capacity_bytes)
    except Exception:
        cap = 64 * 1024 * 1024
    return int(cap * 3 // 4)


# --------------------------------------------------------------------------
# Stage 1: fused key/query + value projection (one wide GEMM per row tile).
# --------------------------------------------------------------------------
def _proj_kernel(x_ref, wkv_ref, skv_ref, bkv_ref, slope_ref, kq_ref, v_ref, *, ck):
    # Single (Cin, Ck+Cv) matmul instead of two narrow ones (MXU lane density).
    y = jnp.dot(x_ref[...], wkv_ref[...], preferred_element_type=jnp.float32)
    z = y * skv_ref[...] + bkv_ref[...]
    # leaky_relu (slope=0.01) on the key/query columns, identity (slope=1.0) on
    # the value columns, selected by a per-column slope vector.
    z = jnp.where(z >= 0, z, slope_ref[...] * z)
    kq_ref[...] = z[:, :ck].astype(kq_ref.dtype)
    v_ref[...] = z[:, ck:].astype(v_ref.dtype)


# --------------------------------------------------------------------------
# Stage 2: flash-style attention + W conv + concat conv + BN + leaky.
# --------------------------------------------------------------------------
def _attn_kernel(q_ref, k_ref, v_ref, xq_ref, ww_ref, bw_ref, wf_ref, sf_ref,
                 bf_ref, out_ref, m_sc, l_sc, acc_sc, *, hw_valid, tk):
    ki = pl.program_id(2)

    @pl.when(ki == 0)
    def _():
        m_sc[...] = jnp.full(m_sc.shape, -jnp.inf, jnp.float32)
        l_sc[...] = jnp.zeros(l_sc.shape, jnp.float32)
        acc_sc[...] = jnp.zeros(acc_sc.shape, jnp.float32)

    # q/k already carry the key_channels^-0.5 scale (folded in the wrapper) and
    # are stored in bf16 -> native bf16 MXU matmul with f32 accumulation.
    s = lax.dot_general(q_ref[...], k_ref[...], (((1,), (1,)), ((), ())),
                        preferred_element_type=jnp.float32)        # (TQ, TK)
    if hw_valid is not None:   # masked tail tile (padded key positions)
        kpos = ki * tk + lax.broadcasted_iota(jnp.int32, s.shape, 1)
        s = jnp.where(kpos < hw_valid, s, -1e30)

    m_prev = m_sc[...]
    m_new = jnp.maximum(m_prev, jnp.max(s, axis=-1, keepdims=True))
    alpha = jnp.exp(m_prev - m_new)
    p = jnp.exp(s - m_new)
    l_sc[...] = alpha * l_sc[...] + jnp.sum(p, axis=-1, keepdims=True)
    acc_sc[...] = alpha * acc_sc[...] + jnp.dot(
        p.astype(jnp.bfloat16), v_ref[...], preferred_element_type=jnp.float32)
    m_sc[...] = m_new

    @pl.when(ki == pl.num_programs(2) - 1)
    def _():
        # Deferred softmax normalization: (TQ, Cv) multiply, reciprocal on EUP.
        ctx = acc_sc[...] * pl.reciprocal(l_sc[...], approx=True)
        attn = jnp.dot(ctx, ww_ref[...],
                       preferred_element_type=jnp.float32) + bw_ref[...]
        # cat([context, feats]) in VMEM -> one wide GEMM for the final conv.
        cat = jnp.concatenate([attn, xq_ref[...]], axis=-1)
        out = jnp.dot(cat, wf_ref[...], preferred_element_type=jnp.float32)
        out_ref[...] = _leaky(out * sf_ref[...] + bf_ref[...]).astype(out_ref.dtype)


def base_oc_module(x_nchw, params):
    """Fused BaseOC_Module forward (inference). x_nchw: (N, Cin, H, W) float32."""
    wk, sk, bk, wv, bv, ww, bw, wf_ctx, wf_x, sf, bf = params
    N, Cin, H, W = x_nchw.shape
    Ck = wk.shape[1]
    Cv = wv.shape[1]
    Cattn = ww.shape[1]
    Cout = wf_x.shape[1]
    HW = H * W

    TQ = TK = _TILE
    HWp = _round_up(HW, _TILE)
    n_q = HWp // TQ
    n_k = HWp // TK
    Cout_p = _round_up(Cout, _LANE)
    Ckv = Ck + Cv
    f32 = jnp.float32

    # ---- wrapper-side parameter folding ------------------------------------
    # Fold the attention scale key_channels^-0.5 into the shared key/query
    # projection: Ck^-0.25 > 0 and leaky_relu is positively homogeneous, so
    # Ck^-0.25 * leaky(s*z + b) == leaky((Ck^-0.25*s)*z + Ck^-0.25*b).
    ckscale = float(Ck) ** -0.25
    wkv = jnp.concatenate([wk, wv], axis=1).astype(f32)              # (Cin, Ck+Cv)
    skv = jnp.concatenate([sk * ckscale, jnp.ones((1, Cv), f32)], axis=1)
    bkv = jnp.concatenate([bk * ckscale, bv], axis=1).astype(f32)
    slopekv = jnp.concatenate([jnp.full((1, Ck), _SLOPE, f32),
                               jnp.ones((1, Cv), f32)], axis=1)

    # Final 1x1 conv on cat([context, feats]): single fused weight, zero-padded
    # to 128 output lanes for an unmasked (lane-dense) writeback.
    wf = jnp.concatenate([wf_ctx, wf_x], axis=0).astype(f32)         # (Cattn+Cin, Cout)
    wf_p = jnp.zeros((Cattn + Cin, Cout_p), f32).at[:, :Cout].set(wf)
    sf_p = jnp.ones((1, Cout_p), f32).at[:, :Cout].set(sf.astype(f32))
    bf_p = jnp.zeros((1, Cout_p), f32).at[:, :Cout].set(bf.astype(f32))

    # NHWC rows, zero-padded to a multiple of the tile size.
    x = jnp.transpose(x_nchw, (0, 2, 3, 1)).reshape(N, HW, Cin).astype(f32)
    if HWp != HW:
        x = jnp.pad(x, ((0, 0), (0, HWp - HW), (0, 0)))

    vmem_limit = _vmem_limit_bytes()

    # ---- stage 1: projections ----------------------------------------------
    const2 = lambda shape: pl.BlockSpec(shape, lambda b, t: (0, 0))
    kq, v = pl.pallas_call(
        functools.partial(_proj_kernel, ck=Ck),
        out_shape=(jax.ShapeDtypeStruct((N, HWp, Ck), jnp.bfloat16),
                   jax.ShapeDtypeStruct((N, HWp, Cv), jnp.bfloat16)),
        grid_spec=pltpu.PrefetchScalarGridSpec(
            num_scalar_prefetch=0,
            grid=(N, HWp // TQ),
            in_specs=[
                pl.BlockSpec((None, TQ, Cin), lambda b, t: (b, t, 0)),
                const2((Cin, Ckv)), const2((1, Ckv)), const2((1, Ckv)),
                const2((1, Ckv)),
            ],
            out_specs=(pl.BlockSpec((None, TQ, Ck), lambda b, t: (b, t, 0)),
                       pl.BlockSpec((None, TQ, Cv), lambda b, t: (b, t, 0))),
        ),
        compiler_params=pltpu.CompilerParams(
            dimension_semantics=("parallel", "parallel"),
            vmem_limit_bytes=vmem_limit),
        cost_estimate=pl.CostEstimate(
            flops=int(2 * N * HWp * Cin * Ckv),
            transcendentals=0,
            bytes_accessed=int(4 * N * HWp * Cin + 2 * N * HWp * Ckv
                               + 4 * Cin * Ckv)),
    )(x, wkv, skv, bkv, slopekv)

    # ---- stage 2: flash attention + output path -----------------------------
    const3 = lambda shape: pl.BlockSpec(shape, lambda b, q, kk: (0, 0))
    attn_kernel = functools.partial(
        _attn_kernel, hw_valid=(HW if HWp != HW else None), tk=TK)
    out = pl.pallas_call(
        attn_kernel,
        out_shape=jax.ShapeDtypeStruct((N, HWp, Cout_p), f32),
        grid_spec=pltpu.PrefetchScalarGridSpec(
            num_scalar_prefetch=0,
            grid=(N, n_q, n_k),
            in_specs=[
                pl.BlockSpec((None, TQ, Ck), lambda b, q, kk: (b, q, 0)),   # q rows
                pl.BlockSpec((None, TK, Ck), lambda b, q, kk: (b, kk, 0)),  # key tile
                pl.BlockSpec((None, TK, Cv), lambda b, q, kk: (b, kk, 0)),  # value tile
                pl.BlockSpec((None, TQ, Cin), lambda b, q, kk: (b, q, 0)),  # feats rows
                const3((Cv, Cattn)), const3((1, Cattn)),
                const3((Cattn + Cin, Cout_p)), const3((1, Cout_p)),
                const3((1, Cout_p)),
            ],
            out_specs=pl.BlockSpec((None, TQ, Cout_p), lambda b, q, kk: (b, q, 0)),
            scratch_shapes=[pltpu.VMEM((TQ, 1), f32),     # running max
                            pltpu.VMEM((TQ, 1), f32),     # running sum
                            pltpu.VMEM((TQ, Cv), f32)],   # unnormalized ctx
        ),
        compiler_params=pltpu.CompilerParams(
            dimension_semantics=("parallel", "parallel", "arbitrary"),
            vmem_limit_bytes=vmem_limit),
        cost_estimate=pl.CostEstimate(
            flops=int(2 * N * HWp * HWp * (Ck + Cv)
                      + 2 * N * HWp * (Cv * Cattn + (Cattn + Cin) * Cout_p)),
            transcendentals=int(N * HWp * HWp),
            bytes_accessed=int(2 * N * HWp * Ck * (1 + n_q)
                               + 2 * N * HWp * Cv * n_q
                               + 4 * N * HWp * (Cin + Cout_p))),
    )(kq, kq, v, x, ww.astype(f32), bw.astype(f32), wf_p, sf_p, bf_p)

    out = out[:, :HW, :Cout]
    return jnp.transpose(out.reshape(N, H, W, Cout), (0, 3, 1, 2))


# --------------------------------------------------------------------------
# Plain-JAX reference (same folded parameters, same math, HIGHEST precision).
# --------------------------------------------------------------------------
def ref_base_oc_module(x_nchw, params):
    wk, sk, bk, wv, bv, ww, bw, wf_ctx, wf_x, sf, bf = params
    N, Cin, H, W = x_nchw.shape
    Ck = wk.shape[1]
    Cout = wf_x.shape[1]
    HW = H * W
    hp = lax.Precision.HIGHEST

    x = jnp.transpose(x_nchw, (0, 2, 3, 1)).reshape(N, HW, Cin).astype(jnp.float32)
    kq = _leaky(jnp.einsum("nqc,ck->nqk", x, wk, precision=hp) * sk + bk)
    v = jnp.einsum("nqc,cv->nqv", x, wv, precision=hp) + bv
    logits = jnp.einsum("nqk,npk->nqp", kq, kq, precision=hp) * (float(Ck) ** -0.5)
    probs = jax.nn.softmax(logits, axis=-1)
    ctx = jnp.einsum("nqp,npv->nqv", probs, v, precision=hp)
    attn = jnp.einsum("nqv,vo->nqo", ctx, ww, precision=hp) + bw
    out = _leaky((jnp.einsum("nqo,od->nqd", attn, wf_ctx, precision=hp)
                  + jnp.einsum("nqc,cd->nqd", x, wf_x, precision=hp)) * sf + bf)
    return jnp.transpose(out.reshape(N, H, W, Cout), (0, 3, 1, 2))


def make_params(key, in_channels, out_channels, key_channels, value_channels):
    """Deterministic parameter init; inference-mode BN folded into scale/bias."""
    eps = 1e-5
    ks = jax.random.split(key, 16)

    def bn_fold(kg, kb, km, kv, c):
        gamma = 1.0 + 0.1 * jax.random.normal(kg, (c,), jnp.float32)
        beta = 0.1 * jax.random.normal(kb, (c,), jnp.float32)
        mean = 0.1 * jax.random.normal(km, (c,), jnp.float32)
        var = jnp.abs(1.0 + 0.1 * jax.random.normal(kv, (c,), jnp.float32))
        s = gamma / jnp.sqrt(var + eps)
        b = beta - mean * s
        return s, b

    # f_key (== f_query): Conv2d(Cin, Ck, 1) + InPlaceABNSync(Ck)
    wk = 0.1 * jax.random.normal(ks[0], (in_channels, key_channels), jnp.float32)
    bk_conv = 0.1 * jax.random.normal(ks[1], (key_channels,), jnp.float32)
    sk, bk_bn = bn_fold(ks[2], ks[3], ks[4], ks[5], key_channels)
    bk = bk_conv * sk + bk_bn

    # f_value: Conv2d(Cin, Cv, 1)
    wv = 0.1 * jax.random.normal(ks[6], (in_channels, value_channels), jnp.float32)
    bv = 0.1 * jax.random.normal(ks[7], (value_channels,), jnp.float32)

    # W: Conv2d(Cv, out_channels, 1). (PyTorch zero-inits W; random here so the
    # full attention path is actually exercised by the test.)
    ww = 0.1 * jax.random.normal(ks[8], (value_channels, out_channels), jnp.float32)
    bw = 0.1 * jax.random.normal(ks[9], (out_channels,), jnp.float32)

    # conv_bn_dropout: Conv2d(2*Cin, Cout, 1) + InPlaceABNSync(Cout) (+ eval Dropout2d)
    wf = 0.1 * jax.random.normal(ks[10], (2 * in_channels, out_channels), jnp.float32)
    bf_conv = 0.1 * jax.random.normal(ks[11], (out_channels,), jnp.float32)
    sf, bf_bn = bn_fold(ks[12], ks[13], ks[14], ks[15], out_channels)
    bf = bf_conv * sf + bf_bn

    cattn = out_channels                       # cat order: [context, feats]
    wf_ctx = wf[:cattn]
    wf_x = wf[cattn:]

    return (wk, sk.reshape(1, -1), bk.reshape(1, -1),
            wv, bv.reshape(1, -1),
            ww, bw.reshape(1, -1),
            wf_ctx, wf_x, sf.reshape(1, -1), bf.reshape(1, -1))


if __name__ == "__main__":
    key = jax.random.PRNGKey(0)
    N, Cin = 2, 32
    key_channels, value_channels = 16, 16
    out_channels = Cin   # BaseOC requires out_channels == in_channels for the concat conv

    kx, kp, kx2 = jax.random.split(key, 3)
    params = make_params(kp, Cin, out_channels, key_channels, value_channels)

    # Case 1: H*W = 256 -> 2 query tiles x 2 key tiles (multi-tile flash path).
    x = jax.random.normal(kx, (N, Cin, 16, 16), jnp.float32)
    out = jax.block_until_ready(base_oc_module(x, params))
    ref = jax.block_until_ready(ref_base_oc_module(x, params))
    assert out.shape == (N, out_channels, 16, 16), out.shape
    # bf16 attention matmuls eat slightly into the f32 margin -> 2e-3.
    np.testing.assert_allclose(np.asarray(out), np.asarray(ref), rtol=2e-3, atol=2e-3)

    # Case 2: H*W = 100 -> padded to 128 with a masked key tail.
    x2 = jax.random.normal(kx2, (N, Cin, 10, 10), jnp.float32)
    out2 = jax.block_until_ready(base_oc_module(x2, params))
    ref2 = jax.block_until_ready(ref_base_oc_module(x2, params))
    assert out2.shape == (N, out_channels, 10, 10), out2.shape
    np.testing.assert_allclose(np.asarray(out2), np.asarray(ref2), rtol=2e-3, atol=2e-3)

    print("KERNEL_OK")
</pallas_src>

<mosaic_0001>
module attributes {stable_mosaic.version = 11 : i64} {
  func.func @_proj_kernel(%arg0: i32, %arg1: i32, %arg2: memref<1x128x32xf32, #tpu.memory_space<vmem>>, %arg3: memref<32x32xf32, #tpu.memory_space<vmem>>, %arg4: memref<1x32xf32, #tpu.memory_space<vmem>>, %arg5: memref<1x32xf32, #tpu.memory_space<vmem>>, %arg6: memref<1x32xf32, #tpu.memory_space<vmem>>, %arg7: memref<1x128x16xbf16, #tpu.memory_space<vmem>>, %arg8: memref<1x128x16xbf16, #tpu.memory_space<vmem>>) attributes {dimension_semantics = [#tpu.dimension_semantics<parallel>, #tpu.dimension_semantics<parallel>], iteration_bounds = array<i64: 2, 2>, scalar_prefetch = 0 : i64, scratch_operands = 0 : i64, tpu.core_type = #tpu.core_type<tc>, window_params = [{transform_indices = @transform_0, window_bounds = array<i64: 1, 128, 32>}, {pipeline_mode = #tpu.pipeline_mode<synchronous>, transform_indices = @transform_1, window_bounds = array<i64: 32, 32>}, {pipeline_mode = #tpu.pipeline_mode<synchronous>, transform_indices = @transform_2, window_bounds = array<i64: 1, 32>}, {pipeline_mode = #tpu.pipeline_mode<synchronous>, transform_indices = @transform_3, window_bounds = array<i64: 1, 32>}, {pipeline_mode = #tpu.pipeline_mode<synchronous>, transform_indices = @transform_4, window_bounds = array<i64: 1, 32>}, {transform_indices = @transform_5, window_bounds = array<i64: 1, 128, 16>}, {transform_indices = @transform_6, window_bounds = array<i64: 1, 128, 16>}]} {
    %c0 = arith.constant 0 : index
    %c0_0 = arith.constant 0 : index
    %c0_1 = arith.constant 0 : index
    %0 = vector.load %arg2[%c0, %c0_0, %c0_1] : memref<1x128x32xf32, #tpu.memory_space<vmem>>, vector<1x128x32xf32>
    %1 = vector.shape_cast %0 : vector<1x128x32xf32> to vector<128x32xf32>
    %c0_2 = arith.constant 0 : index
    %c0_3 = arith.constant 0 : index
    %2 = vector.load %arg3[%c0_2, %c0_3] : memref<32x32xf32, #tpu.memory_space<vmem>>, vector<32x32xf32>
    %cst = arith.constant dense<0.000000e+00> : vector<128x32xf32>
    %3 = tpu.matmul %1, %2, %cst {dimension_numbers = #tpu.dot_dimension_numbers<[1], [0], [0], [1], [0, 0, 1, 1], [], []>} : vector<128x32xf32>, vector<32x32xf32>, vector<128x32xf32> -> vector<128x32xf32>
    %c0_4 = arith.constant 0 : index
    %c0_5 = arith.constant 0 : index
    %4 = vector.load %arg4[%c0_4, %c0_5] : memref<1x32xf32, #tpu.memory_space<vmem>>, vector<1x32xf32>
    %5 = vector.broadcast %4 : vector<1x32xf32> to vector<128x32xf32>
    %6 = arith.mulf %3, %5 : vector<128x32xf32>
    %c0_6 = arith.constant 0 : index
    %c0_7 = arith.constant 0 : index
    %7 = vector.load %arg5[%c0_6, %c0_7] : memref<1x32xf32, #tpu.memory_space<vmem>>, vector<1x32xf32>
    %8 = vector.broadcast %7 : vector<1x32xf32> to vector<128x32xf32>
    %9 = arith.addf %6, %8 : vector<128x32xf32>
    %cst_8 = arith.constant 0.000000e+00 : f32
    %10 = vector.broadcast %cst_8 : f32 to vector<128x32xf32>
    %11 = arith.cmpf oge, %9, %10 : vector<128x32xf32>
    %c0_9 = arith.constant 0 : index
    %c0_10 = arith.constant 0 : index
    %12 = vector.load %arg6[%c0_9, %c0_10] : memref<1x32xf32, #tpu.memory_space<vmem>>, vector<1x32xf32>
    %13 = vector.broadcast %12 : vector<1x32xf32> to vector<128x32xf32>
    %14 = arith.mulf %13, %9 : vector<128x32xf32>
    %15 = arith.select %11, %9, %14 : vector<128x32xi1>, vector<128x32xf32>
    %16 = vector.extract_strided_slice %15 {offsets = [0, 0], sizes = [128, 16], strides = [1, 1]} : vector<128x32xf32> to vector<128x16xf32>
    %17 = arith.truncf %16 : vector<128x16xf32> to vector<128x16xbf16>
    %c0_11 = arith.constant 0 : index
    %c0_12 = arith.constant 0 : index
    %c0_13 = arith.constant 0 : index
    %18 = vector.load %arg7[%c0_11, %c0_12, %c0_13] : memref<1x128x16xbf16, #tpu.memory_space<vmem>>, vector<1x128x16xbf16>
    %19 = vector.shape_cast %18 : vector<1x128x16xbf16> to vector<128x16xbf16>
    %20 = vector.shape_cast %17 : vector<128x16xbf16> to vector<1x128x16xbf16>
    tpu.vector_store %arg7[%c0_11, %c0_12, %c0_13], %20 {strides = array<i32>} : memref<1x128x16xbf16, #tpu.memory_space<vmem>>, vector<1x128x16xbf16>,
    %21 = vector.extract_strided_slice %15 {offsets = [0, 16], sizes = [128, 16], strides = [1, 1]} : vector<128x32xf32> to vector<128x16xf32>
    %22 = arith.truncf %21 : vector<128x16xf32> to vector<128x16xbf16>
    %c0_14 = arith.constant 0 : index
    %c0_15 = arith.constant 0 : index
    %c0_16 = arith.constant 0 : index
    %23 = vector.load %arg8[%c0_14, %c0_15, %c0_16] : memref<1x128x16xbf16, #tpu.memory_space<vmem>>, vector<1x128x16xbf16>
    %24 = vector.shape_cast %23 : vector<1x128x16xbf16> to vector<128x16xbf16>
    %25 = vector.shape_cast %22 : vector<128x16xbf16> to vector<1x128x16xbf16>
    tpu.vector_store %arg8[%c0_14, %c0_15, %c0_16], %25 {strides = array<i32>} : memref<1x128x16xbf16, #tpu.memory_space<vmem>>, vector<1x128x16xbf16>,
    return
  }
  func.func @transform_0(%arg0: i32, %arg1: i32) -> (i32, i32, i32) {
    %c0_i32 = arith.constant 0 : i32
    %c0_i32_0 = arith.constant 0 : i32
    return %arg0, %arg1, %c0_i32 : i32, i32, i32
  }
  func.func @transform_1(%arg0: i32, %arg1: i32) -> (i32, i32) {
    %c0_i32 = arith.constant 0 : i32
    %c0_i32_0 = arith.constant 0 : i32
    %c0_i32_1 = arith.constant 0 : i32
    return %c0_i32, %c0_i32_0 : i32, i32
  }
  func.func @transform_2(%arg0: i32, %arg1: i32) -> (i32, i32) {
    %c0_i32 = arith.constant 0 : i32
    %c0_i32_0 = arith.constant 0 : i32
    %c0_i32_1 = arith.constant 0 : i32
    return %c0_i32, %c0_i32_0 : i32, i32
  }
  func.func @transform_3(%arg0: i32, %arg1: i32) -> (i32, i32) {
    %c0_i32 = arith.constant 0 : i32
    %c0_i32_0 = arith.constant 0 : i32
    %c0_i32_1 = arith.constant 0 : i32
    return %c0_i32, %c0_i32_0 : i32, i32
  }
  func.func @transform_4(%arg0: i32, %arg1: i32) -> (i32, i32) {
    %c0_i32 = arith.constant 0 : i32
    %c0_i32_0 = arith.constant 0 : i32
    %c0_i32_1 = arith.constant 0 : i32
    return %c0_i32, %c0_i32_0 : i32, i32
  }
  func.func @transform_5(%arg0: i32, %arg1: i32) -> (i32, i32, i32) {
    %c0_i32 = arith.constant 0 : i32
    %c0_i32_0 = arith.constant 0 : i32
    return %arg0, %arg1, %c0_i32 : i32, i32, i32
  }
  func.func @transform_6(%arg0: i32, %arg1: i32) -> (i32, i32, i32) {
    %c0_i32 = arith.constant 0 : i32
    %c0_i32_0 = arith.constant 0 : i32
    return %arg0, %arg1, %c0_i32 : i32, i32, i32
  }
}

</mosaic_0001>

<llo_original>
// kernel: tpu_custom_call.1
$region0: #{tpu_custom_call.1}
  #allocation0 [shape = 'u32[]', space=smem, size = 0x4, offset = 0x4, fixed_abs, tag = 'smem constant byte address 0x4 - core index']
  #allocation1 [shape = 'u32[144,128]{1,0:T(1,128)}', space=vmem, size = 0x12000, scoped, tag = 'internal scratch']
  %s0 = inlined_call_operand.vmem [shape: f32[2,256,32], index: 0, kind: input, shape index: {}]
  %s1 = inlined_call_operand.vmem [shape: f32[32,32], index: 1, kind: input, shape index: {}]
  %s2 = inlined_call_operand.vmem [shape: f32[1,32], index: 2, kind: input, shape index: {}]
  %s3 = inlined_call_operand.vmem [shape: f32[1,32], index: 3, kind: input, shape index: {}]
  %s4 = inlined_call_operand.vmem [shape: f32[1,32], index: 4, kind: input, shape index: {}]
  %s5 = inlined_call_operand.vmem [shape: bf16[2,256,16], index: 5, kind: output, shape index: {0}]
  %s6 = inlined_call_operand.vmem [shape: bf16[2,256,16], index: 6, kind: output, shape index: {1}]
  %7 = xla_tuple %s5, %s6
  %s8 = sld [smem:[#allocation0]]
  $region61: #{tpu_custom_call.1} parent=0
    _
  %s10 = ssub.s32 1, %s8
  %s11 = scalar_select 0, %s10, %s8
  loop: start=0, step=1, limit=6
  $region2: #{tpu_custom_call.1} parent=0 // loop_pre_header
    _
  $region3: #{tpu_custom_call.1} parent=0 // loop_header
    %s13 = sphi 0, %s17
    %p14 = scmp.ge.s32.totalorder %s13, 6
    %s20 = sphi 0, %s32
    %s21 = sphi 0, %s28
    %s22 = sphi 0, %s20
    %s23 = sphi 0, %s21
    %s24 = sphi 0, %s22
    %s25 = sphi 0, %s23
    %s37 = sphi 0, %s39
    %s40 = sphi 0, %s37
    %s41 = sphi 0, %s40
    %s57 = sphi 0, %s41
    %s61 = sphi 0, %s61
    %s63 = sphi 0, %s61
    %s64 = sphi 0, %s63
    %s78 = sphi 0, %s64
    %s82 = sphi 0, %s82
    %s84 = sphi 0, %s82
    %s85 = sphi 0, %s84
    %s99 = sphi 0, %s85
    %s103 = sphi 0, %s103
    %s105 = sphi 0, %s103
    %s106 = sphi 0, %s105
    %s120 = sphi 0, %s106
    %s124 = sphi 0, %s124
    %s126 = sphi 0, %s124
    %s127 = sphi 0, %s126
    %s141 = sphi 0, %s127
    %s149 = sphi 0, %s151
    %s152 = sphi 0, %s149
    %s153 = sphi 0, %s152
    %s169 = sphi 0, %s153
    %s177 = sphi 0, %s179
    %s180 = sphi 0, %s177
    %s181 = sphi 0, %s180
    %s197 = sphi 0, %s181
  $region4: #{tpu_custom_call.1} parent=0 // loop_header_branch
    %16 = sbr.rel (%p14) target = $region8
  $region5: #{tpu_custom_call.1} parent=0 // loop_body
    %s18 = ssub.s32 %s13, 1
    %s19 = ssub.s32 %s13, 2
    %s26 = sadd.s32 1, %s21
    %p27 = scmp.ge.s32.totalorder %s26, 2
    %s28 = scalar_select %p27, 0, %s26
    %s29 = sadd.s32 1, %s20
    %s30 = scalar_select %p27, %s29, %s20
    %p31 = scmp.ge.s32.totalorder %s30, 2
    %s32 = scalar_select %p31, 0, %s30
    %s33 = ssub.s32 %s20, %s32
    %s34 = ssub.s32 %s21, %s28
    %s35 = sor.u32 %s33, %s34
    %p36 = scmp.eq.s32.totalorder %s35, 0
    %s38 = sadd.s32 %s37, 1
    %s39 = scalar_select %p36, %s37, %s38
    %p42 = pneg %p36
    %p43 = scmp.eq.s32.totalorder %s13, 3
    %p44 = por %p42, %p43
    %p45 = scmp.ne.s32.totalorder %s37, %s40
    %p46 = scmp.eq.s32.totalorder %s13, 0
    %p47 = por %p45, %p46
    %p48 = scmp.ne.s32.totalorder %s37, %s40
    %p49 = scmp.eq.s32.totalorder %s18, 3
    %p50 = por %p48, %p49
    %p51 = scmp.ne.s32.totalorder %s40, %s41
    %p52 = scmp.eq.s32.totalorder %s18, 0
    %p53 = por %p51, %p52
    %p54 = scmp.ne.s32.totalorder %s40, %s41
    %p55 = scmp.eq.s32.totalorder %s19, 3
    %p56 = por %p54, %p55
    %p58 = scmp.ne.s32.totalorder %s41, %s57
    %p59 = scmp.eq.s32.totalorder %s19, 0
    %p60 = por %p58, %p59
    %s62 = sadd.s32 %s61, 1
    %p65 = scmp.eq.s32.totalorder %s13, 3
    %p66 = scmp.ne.s32.totalorder %s61, %s63
    %p67 = scmp.eq.s32.totalorder %s13, 0
    %p68 = por %p66, %p67
    %p69 = scmp.ne.s32.totalorder %s61, %s63
    %p70 = scmp.eq.s32.totalorder %s18, 3
    %p71 = por %p69, %p70
    %p72 = scmp.ne.s32.totalorder %s63, %s64
    %p73 = scmp.eq.s32.totalorder %s18, 0
    %p74 = por %p72, %p73
    %p75 = scmp.ne.s32.totalorder %s63, %s64
    %p76 = scmp.eq.s32.totalorder %s19, 3
    %p77 = por %p75, %p76
    %p79 = scmp.ne.s32.totalorder %s64, %s78
    %p80 = scmp.eq.s32.totalorder %s19, 0
    %p81 = por %p79, %p80
    %s83 = sadd.s32 %s82, 1
    %p86 = scmp.eq.s32.totalorder %s13, 3
    %p87 = scmp.ne.s32.totalorder %s82, %s84
    %p88 = scmp.eq.s32.totalorder %s13, 0
    %p89 = por %p87, %p88
    %p90 = scmp.ne.s32.totalorder %s82, %s84
    %p91 = scmp.eq.s32.totalorder %s18, 3
    %p92 = por %p90, %p91
    %p93 = scmp.ne.s32.totalorder %s84, %s85
    %p94 = scmp.eq.s32.totalorder %s18, 0
    %p95 = por %p93, %p94
    %p96 = scmp.ne.s32.totalorder %s84, %s85
    %p97 = scmp.eq.s32.totalorder %s19, 3
    %p98 = por %p96, %p97
    %p100 = scmp.ne.s32.totalorder %s85, %s99
    %p101 = scmp.eq.s32.totalorder %s19, 0
    %p102 = por %p100, %p101
    %s104 = sadd.s32 %s103, 1
    %p107 = scmp.eq.s32.totalorder %s13, 3
    %p108 = scmp.ne.s32.totalorder %s103, %s105
    %p109 = scmp.eq.s32.totalorder %s13, 0
    %p110 = por %p108, %p109
    %p111 = scmp.ne.s32.totalorder %s103, %s105
    %p112 = scmp.eq.s32.totalorder %s18, 3
    %p113 = por %p111, %p112
    %p114 = scmp.ne.s32.totalorder %s105, %s106
    %p115 = scmp.eq.s32.totalorder %s18, 0
    %p116 = por %p114, %p115
    %p117 = scmp.ne.s32.totalorder %s105, %s106
    %p118 = scmp.eq.s32.totalorder %s19, 3
    %p119 = por %p117, %p118
    %p121 = scmp.ne.s32.totalorder %s106, %s120
    %p122 = scmp.eq.s32.totalorder %s19, 0
    %p123 = por %p121, %p122
    %s125 = sadd.s32 %s124, 1
    %p128 = scmp.eq.s32.totalorder %s13, 3
    %p129 = scmp.ne.s32.totalorder %s124, %s126
    %p130 = scmp.eq.s32.totalorder %s13, 0
    %p131 = por %p129, %p130
    %p132 = scmp.ne.s32.totalorder %s124, %s126
    %p133 = scmp.eq.s32.totalorder %s18, 3
    %p134 = por %p132, %p133
    %p135 = scmp.ne.s32.totalorder %s126, %s127
    %p136 = scmp.eq.s32.totalorder %s18, 0
    %p137 = por %p135, %p136
    %p138 = scmp.ne.s32.totalorder %s126, %s127
    %p139 = scmp.eq.s32.totalorder %s19, 3
    %p140 = por %p138, %p139
    %p142 = scmp.ne.s32.totalorder %s127, %s141
    %p143 = scmp.eq.s32.totalorder %s19, 0
    %p144 = por %p142, %p143
    %s145 = ssub.s32 %s20, %s32
    %s146 = ssub.s32 %s21, %s28
    %s147 = sor.u32 %s145, %s146
    %p148 = scmp.eq.s32.totalorder %s147, 0
    %s150 = sadd.s32 %s149, 1
    %s151 = scalar_select %p148, %s149, %s150
    %p154 = pneg %p148
    %p155 = scmp.eq.s32.totalorder %s13, 3
    %p156 = por %p154, %p155
    %p157 = scmp.ne.s32.totalorder %s149, %s152
    %p158 = scmp.eq.s32.totalorder %s13, 0
    %p159 = por %p157, %p158
    %p160 = scmp.ne.s32.totalorder %s149, %s152
    %p161 = scmp.eq.s32.totalorder %s18, 3
    %p162 = por %p160, %p161
    %p163 = scmp.ne.s32.totalorder %s152, %s153
    %p164 = scmp.eq.s32.totalorder %s18, 0
    %p165 = por %p163, %p164
    %p166 = scmp.ne.s32.totalorder %s152, %s153
    %p167 = scmp.eq.s32.totalorder %s19, 3
    %p168 = por %p166, %p167
    %p170 = scmp.ne.s32.totalorder %s153, %s169
    %p171 = scmp.eq.s32.totalorder %s19, 0
    %p172 = por %p170, %p171
    %s173 = ssub.s32 %s20, %s32
    %s174 = ssub.s32 %s21, %s28
    %s175 = sor.u32 %s173, %s174
    %p176 = scmp.eq.s32.totalorder %s175, 0
    %s178 = sadd.s32 %s177, 1
    %s179 = scalar_select %p176, %s177, %s178
    %p182 = pneg %p176
    %p183 = scmp.eq.s32.totalorder %s13, 3
    %p184 = por %p182, %p183
    %p185 = scmp.ne.s32.totalorder %s177, %s180
    %p186 = scmp.eq.s32.totalorder %s13, 0
    %p187 = por %p185, %p186
    %p188 = scmp.ne.s32.totalorder %s177, %s180
    %p189 = scmp.eq.s32.totalorder %s18, 3
    %p190 = por %p188, %p189
    %p191 = scmp.ne.s32.totalorder %s180, %s181
    %p192 = scmp.eq.s32.totalorder %s18, 0
    %p193 = por %p191, %p192
    %p194 = scmp.ne.s32.totalorder %s180, %s181
    %p195 = scmp.eq.s32.totalorder %s19, 3
    %p196 = por %p194, %p195
    %p198 = scmp.ne.s32.totalorder %s181, %s197
    %p199 = scmp.eq.s32.totalorder %s19, 0
    %p200 = por %p198, %p199
    %p201 = scmp.le.s32.totalorder 1, %s13
    %p202 = scmp.lt.s32.totalorder %s13, 5
    %p203 = pnand %p201, %p202
    %p204 = pneg %p203
    // Predicated region
    $region9: #{tpu_custom_call.1} parent=5 // pred_check
      _
    $region10: #{tpu_custom_call.1} parent=5 // pred_check_branch
      %206 = sbr.rel (%p203) target = $region12
    $region11: #{tpu_custom_call.1} parent=5 // pred_region
      %s207 = ssub.s32 %s13, 1
      // Predicated region
      $region13: #{tpu_custom_call.1} parent=11 // pred_check
        %p208 = pneg %p74
      $region14: #{tpu_custom_call.1} parent=11 // pred_check_branch
        %210 = sbr.rel (%p208) target = $region16
      $region15: #{tpu_custom_call.1} parent=11 // pred_region
        _
      $region16: #{tpu_custom_call.1} parent=11 // pred_fallthru
        _
      // Predicated region
      $region17: #{tpu_custom_call.1} parent=11 // pred_check
        %p211 = pneg %p95
      $region18: #{tpu_custom_call.1} parent=11 // pred_check_branch
        %213 = sbr.rel (%p211) target = $region20
      $region19: #{tpu_custom_call.1} parent=11 // pred_region
        _
      $region20: #{tpu_custom_call.1} parent=11 // pred_fallthru
        _
      // Predicated region
      $region21: #{tpu_custom_call.1} parent=11 // pred_check
        %p214 = pneg %p116
      $region22: #{tpu_custom_call.1} parent=11 // pred_check_branch
        %216 = sbr.rel (%p214) target = $region24
      $region23: #{tpu_custom_call.1} parent=11 // pred_region
        _
      $region24: #{tpu_custom_call.1} parent=11 // pred_fallthru
        _
      // Predicated region
      $region25: #{tpu_custom_call.1} parent=11 // pred_check
        %p217 = pneg %p137
      $region26: #{tpu_custom_call.1} parent=11 // pred_check_branch
        %219 = sbr.rel (%p217) target = $region28
      $region27: #{tpu_custom_call.1} parent=11 // pred_region
        _
      $region28: #{tpu_custom_call.1} parent=11 // pred_fallthru
        _
    $region12: #{tpu_custom_call.1} parent=5 // pred_fallthru
      _
    %p220 = scmp.lt.s32.totalorder %s13, 4
    // Predicated region
    $region29: #{tpu_custom_call.1} parent=5 // pred_check
      %p221 = pneg %p220
    $region30: #{tpu_custom_call.1} parent=5 // pred_check_branch
      %223 = sbr.rel (%p221) target = $region32
    $region31: #{tpu_custom_call.1} parent=5 // pred_region
      // Predicated region
      $region33: #{tpu_custom_call.1} parent=31 // pred_check
        %p224 = pneg %p47
      $region34: #{tpu_custom_call.1} parent=31 // pred_check_branch
        %226 = sbr.rel (%p224) target = $region36
      $region35: #{tpu_custom_call.1} parent=31 // pred_region
        %s227 = smul.u32 16, %s21
        %p228 = scmp.lt.s32.totalorder %s20, 1
        %s229 = scalar_select %p228, %s20, 1
        %p230 = scmp.lt.s32.totalorder %s227, 31
        %s231 = scalar_select %p230, %s227, 31
        %s232 = smul.addr %s229, 32
        %s233 = sadd.s32 %s231, %s232
        %s234 = smul.addr %s233, 8
        %s235 = scalar_lea.vmem %s0, %s234
        %s236 = smul.u32 16, %s21
      $region36: #{tpu_custom_call.1} parent=31 // pred_fallthru
        _
    $region32: #{tpu_custom_call.1} parent=5 // pred_fallthru
      _
    %p237 = scmp.le.s32.totalorder 1, %s13
    %p238 = scmp.lt.s32.totalorder %s13, 5
    %p239 = pnand %p237, %p238
    %p240 = pneg %p239
    // Predicated region
    $region37: #{tpu_custom_call.1} parent=5 // pred_check
      _
    $region38: #{tpu_custom_call.1} parent=5 // pred_check_branch
      %242 = sbr.rel (%p239) target = $region40
    $region39: #{tpu_custom_call.1} parent=5 // pred_region
      %s243 = ssub.s32 %s13, 1
      %s244 = smul.u32 16, %s23
      %p245 = scmp.lt.s32.totalorder %s22, 1
      %s246 = scalar_select %p245, %s22, 1
      %p247 = scmp.lt.s32.totalorder %s244, 31
      %s248 = scalar_select %p247, %s244, 31
      %s249 = smul.addr %s246, 32
      %s250 = sadd.s32 %s248, %s249
      %s251 = smul.addr %s250, 8
      %s252 = scalar_lea.vmem %s0, %s251
      %p253 = pneg %p53
      %p254 = pneg %p50
      %p255 = pneg %p74
      %p256 = pneg %p71
      %p257 = pneg %p95
      %p258 = pneg %p92
      %p259 = pneg %p116
      %p260 = pneg %p113
      %p261 = pneg %p137
      %p262 = pneg %p134
      %p263 = pneg %p165
      %p264 = pneg %p162
      %s265 = smul.u32 16, %s23
      %p266 = scmp.lt.s32.totalorder %s22, 1
      %s267 = scalar_select %p266, %s22, 1
      %p268 = scmp.lt.s32.totalorder %s265, 31
      %s269 = scalar_select %p268, %s265, 31
      %s270 = smul.addr %s267, 32
      %s271 = sadd.s32 %s269, %s270
      %s272 = smul.addr %s271, 4
      %s273 = scalar_lea.vmem %s5, %s272
      %p274 = pneg %p193
      %p275 = pneg %p190
      %s276 = smul.u32 16, %s23
      %p277 = scmp.lt.s32.totalorder %s22, 1
      %s278 = scalar_select %p277, %s22, 1
      %p279 = scmp.lt.s32.totalorder %s276, 31
      %s280 = scalar_select %p279, %s276, 31
      %s281 = smul.addr %s278, 32
      %s282 = sadd.s32 %s280, %s281
      %s283 = smul.addr %s282, 4
      %s284 = scalar_lea.vmem %s6, %s283
      %s285 = smul.u32 16, %s23
      %p286 = scmp.lt.s32.totalorder %s22, 1
      %s287 = scalar_select %p286, %s22, 1
      %p288 = scmp.lt.s32.totalorder %s285, 31
      %s289 = scalar_select %p288, %s285, 31
      %s290 = smul.addr %s287, 32
      %s291 = sadd.s32 %s289, %s290
      %s292 = smul.addr %s291, 8
      %s293 = scalar_lea.vmem %s0, %s292
      %s294 = smul.u32 16, %s23
      %s295 = smul.u32 16, %s23
      %p296 = scmp.lt.s32.totalorder %s22, 1
      %s297 = scalar_select %p296, %s22, 1
      %p298 = scmp.lt.s32.totalorder %s295, 31
      %s299 = scalar_select %p298, %s295, 31
      %s300 = smul.addr %s297, 32
      %s301 = sadd.s32 %s299, %s300
      %s302 = smul.addr %s301, 4
      %s303 = scalar_lea.vmem %s5, %s302
      %s304 = smul.u32 16, %s23
      %s305 = smul.u32 16, %s23
      %p306 = scmp.lt.s32.totalorder %s22, 1
      %s307 = scalar_select %p306, %s22, 1
      %p308 = scmp.lt.s32.totalorder %s305, 31
      %s309 = scalar_select %p308, %s305, 31
      %s310 = smul.addr %s307, 32
      %s311 = sadd.s32 %s309, %s310
      %s312 = smul.addr %s311, 4
      %s313 = scalar_lea.vmem %s6, %s312
      %s314 = smul.u32 16, %s23
      %v315 = vld [vmem:[%s293] sm:$0xff]
      %v316 = vld [vmem:[%s293 + $0x8] sm:$0xff]
      %v317 = vld [vmem:[%s293 + $0x10] sm:$0xff]
      %v318 = vld [vmem:[%s293 + $0x18] sm:$0xff]
      %v319 = vld [vmem:[%s293 + $0x20] sm:$0xff]
      %v320 = vld [vmem:[%s293 + $0x28] sm:$0xff]
      %v321 = vld [vmem:[%s293 + $0x30] sm:$0xff]
      %v322 = vld [vmem:[%s293 + $0x38] sm:$0xff]
      %v323 = vld [vmem:[%s293 + $0x40] sm:$0xff]
      %v324 = vld [vmem:[%s293 + $0x48] sm:$0xff]
      %v325 = vld [vmem:[%s293 + $0x50] sm:$0xff]
      %v326 = vld [vmem:[%s293 + $0x58] sm:$0xff]
      %v327 = vld [vmem:[%s293 + $0x60] sm:$0xff]
      %v328 = vld [vmem:[%s293 + $0x68] sm:$0xff]
      %v329 = vld [vmem:[%s293 + $0x70] sm:$0xff]
      %v330 = vld [vmem:[%s293 + $0x78] sm:$0xff]
      %v331 = vld [vmem:[%s1] sm:$0xff]
      %v332 = vld [vmem:[%s1 + $0x8] sm:$0xff]
      %v333 = vld [vmem:[%s1 + $0x10] sm:$0xff]
      %v334 = vld [vmem:[%s1 + $0x18] sm:$0xff]
      %vm335 = vcmask 261120
      %v337 = vsel %vm335, %v315, 0
      %v340 = vsel %vm335, %v316, 0
      %v343 = vsel %vm335, %v317, 0
      %v346 = vsel %vm335, %v318, 0
      %v349 = vsel %vm335, %v319, 0
      %v352 = vsel %vm335, %v320, 0
      %v355 = vsel %vm335, %v321, 0
      %v358 = vsel %vm335, %v322, 0
      %v361 = vsel %vm335, %v323, 0
      %v364 = vsel %vm335, %v324, 0
      %v367 = vsel %vm335, %v325, 0
      %v370 = vsel %vm335, %v326, 0
      %v373 = vsel %vm335, %v327, 0
      %v376 = vsel %vm335, %v328, 0
      %v379 = vsel %vm335, %v329, 0
      %v382 = vsel %vm335, %v330, 0
      %384 = vmatprep.subr.mxu0 0.0
      %385 = vmatpush1.msra.mxu0 %v331
      %386 = vmatprep.subr.mxu0 0.0
      %387 = vmatpush1.msra.mxu0 %v332
      %388 = vmatprep.subr.mxu0 0.0
      %389 = vmatpush1.msra.mxu0 %v333
      %390 = vmatprep.subr.mxu0 0.0
      %391 = vmatpush1.msra.mxu0 %v334
      %392 = vmatprep.subr.mxu0 0.0
      %393 = vmatpush1.msra.mxu0 0.0
      %394 = vmatprep.subr.mxu0 0.0
      %395 = vmatpush1.msra.mxu0 0.0
      %396 = vmatprep.subr.mxu0 0.0
      %397 = vmatpush1.msra.mxu0 0.0
      %398 = vmatprep.subr.mxu0 0.0
      %399 = vmatpush1.msra.mxu0 0.0
      %400 = vmatprep.subr.mxu0 0.0
      %401 = vmatpush1.msra.mxu0 0.0
      %402 = vmatprep.subr.mxu0 0.0
      %403 = vmatpush1.msra.mxu0 0.0
      %404 = vmatprep.subr.mxu0 0.0
      %405 = vmatpush1.msra.mxu0 0.0
      %406 = vmatprep.subr.mxu0 0.0
      %407 = vmatpush1.msra.mxu0 0.0
      %408 = vmatprep.subr.mxu0 0.0
      %409 = vmatpush1.msra.mxu0 0.0
      %410 = vmatprep.subr.mxu0 0.0
      %411 = vmatpush1.msra.mxu0 0.0
      %412 = vmatprep.subr.mxu0 0.0
      %413 = vmatpush1.msra.mxu0 0.0
      %414 = vmatprep.subr.mxu0 0.0
      %415 = vmatpush1.msra.mxu0 0.0
      %416 = vmatprep.subr.mxu0 0.0
      %417 = vmatpush1.msra.mxu0 0.0
      %418 = vmatprep.subr.mxu0 0.0
      %419 = vmatpush1.msra.mxu0 0.0
      %420 = vmatprep.subr.mxu0 0.0
      %421 = vmatpush1.msra.mxu0 0.0
      %422 = vmatprep.subr.mxu0 0.0
      %423 = vmatpush1.msra.mxu0 0.0
      %424 = vmatprep.subr.mxu0 0.0
      %425 = vmatpush1.msra.mxu0 0.0
      %426 = vmatprep.subr.mxu0 0.0
      %427 = vmatpush1.msra.mxu0 0.0
      %428 = vmatprep.subr.mxu0 0.0
      %429 = vmatpush1.msra.mxu0 0.0
      %430 = vmatprep.subr.mxu0 0.0
      %431 = vmatpush1.msra.mxu0 0.0
      %432 = vmatprep.subr.mxu0 0.0
      %433 = vmatpush1.msra.mxu0 0.0
      %434 = vmatprep.subr.mxu0 0.0
      %435 = vmatpush1.msra.mxu0 0.0
      %436 = vmatprep.subr.mxu0 0.0
      %437 = vmatpush1.msra.mxu0 0.0
      %438 = vmatprep.subr.mxu0 0.0
      %439 = vmatpush1.msra.mxu0 0.0
      %440 = vmatprep.subr.mxu0 0.0
      %441 = vmatpush1.msra.mxu0 0.0
      %442 = vmatprep.subr.mxu0 0.0
      %443 = vmatpush1.msra.mxu0 0.0
      %444 = vmatprep.subr.mxu0 0.0
      %445 = vmatpush1.msra.mxu0 0.0
      %446 = vmatprep.subr.mxu0 0.0
      %447 = vmatpush1.msra.mxu0 0.0
      %448 = vmatprep.mubr.f32.mxu0 0.0
      %449 = vmatmul.mubr.f32.gmra.mrb[0].mxu0 %v337
      %v450 = vpop.f32.mrb[0].mxu0
      %v451 = vadd.f32 0.0, %v450
      %v452 = vpop.f32.mrb[0].mxu0
      %453 = vmatprep.mubr.f32.mxu0 0.0
      %454 = vmatmul.mubr.f32.gmra.mrb[0].mxu0 %v340
      %v455 = vpop.f32.mrb[0].mxu0
      %v456 = vadd.f32 0.0, %v455
      %v457 = vpop.f32.mrb[0].mxu0
      %458 = vmatprep.mubr.f32.mxu0 0.0
      %459 = vmatmul.mubr.f32.gmra.mrb[0].mxu0 %v343
      %v460 = vpop.f32.mrb[0].mxu0
      %v461 = vadd.f32 0.0, %v460
      %v462 = vpop.f32.mrb[0].mxu0
      %463 = vmatprep.mubr.f32.mxu0 0.0
      %464 = vmatmul.mubr.f32.gmra.mrb[0].mxu0 %v346
      %v465 = vpop.f32.mrb[0].mxu0
      %v466 = vadd.f32 0.0, %v465
      %v467 = vpop.f32.mrb[0].mxu0
      %468 = vmatprep.mubr.f32.mxu0 0.0
      %469 = vmatmul.mubr.f32.gmra.mrb[0].mxu0 %v349
      %v470 = vpop.f32.mrb[0].mxu0
      %v471 = vadd.f32 0.0, %v470
      %v472 = vpop.f32.mrb[0].mxu0
      %473 = vmatprep.mubr.f32.mxu0 0.0
      %474 = vmatmul.mubr.f32.gmra.mrb[0].mxu0 %v352
      %v475 = vpop.f32.mrb[0].mxu0
      %v476 = vadd.f32 0.0, %v475
      %v477 = vpop.f32.mrb[0].mxu0
      %478 = vmatprep.mubr.f32.mxu0 0.0
      %479 = vmatmul.mubr.f32.gmra.mrb[0].mxu0 %v355
      %v480 = vpop.f32.mrb[0].mxu0
      %v481 = vadd.f32 0.0, %v480
      %v482 = vpop.f32.mrb[0].mxu0
      %483 = vmatprep.mubr.f32.mxu0 0.0
      %484 = vmatmul.mubr.f32.gmra.mrb[0].mxu0 %v358
      %v485 = vpop.f32.mrb[0].mxu0
      %v486 = vadd.f32 0.0, %v485
      %v487 = vpop.f32.mrb[0].mxu0
      %488 = vmatprep.mubr.f32.mxu0 0.0
      %489 = vmatmul.mubr.f32.gmra.mrb[0].mxu0 %v361
      %v490 = vpop.f32.mrb[0].mxu0
      %v491 = vadd.f32 0.0, %v490
      %v492 = vpop.f32.mrb[0].mxu0
      %493 = vmatprep.mubr.f32.mxu0 0.0
      %494 = vmatmul.mubr.f32.gmra.mrb[0].mxu0 %v364
      %v495 = vpop.f32.mrb[0].mxu0
      %v496 = vadd.f32 0.0, %v495
      %v497 = vpop.f32.mrb[0].mxu0
      %498 = vmatprep.mubr.f32.mxu0 0.0
      %499 = vmatmul.mubr.f32.gmra.mrb[0].mxu0 %v367
      %v500 = vpop.f32.mrb[0].mxu0
      %v501 = vadd.f32 0.0, %v500
      %v502 = vpop.f32.mrb[0].mxu0
      %503 = vmatprep.mubr.f32.mxu0 0.0
      %504 = vmatmul.mubr.f32.gmra.mrb[0].mxu0 %v370
      %v505 = vpop.f32.mrb[0].mxu0
      %v506 = vadd.f32 0.0, %v505
      %v507 = vpop.f32.mrb[0].mxu0
      %508 = vmatprep.mubr.f32.mxu0 0.0
      %509 = vmatmul.mubr.f32.gmra.mrb[0].mxu0 %v373
      %v510 = vpop.f32.mrb[0].mxu0
      %v511 = vadd.f32 0.0, %v510
      %v512 = vpop.f32.mrb[0].mxu0
      %513 = vmatprep.mubr.f32.mxu0 0.0
      %514 = vmatmul.mubr.f32.gmra.mrb[0].mxu0 %v376
      %v515 = vpop.f32.mrb[0].mxu0
      %v516 = vadd.f32 0.0, %v515
      %v517 = vpop.f32.mrb[0].mxu0
      %518 = vmatprep.mubr.f32.mxu0 0.0
      %519 = vmatmul.mubr.f32.gmra.mrb[0].mxu0 %v379
      %v520 = vpop.f32.mrb[0].mxu0
      %v521 = vadd.f32 0.0, %v520
      %v522 = vpop.f32.mrb[0].mxu0
      %523 = vmatprep.mubr.f32.mxu0 0.0
      %524 = vmatmul.mubr.f32.gmra.mrb[0].mxu0 %v382
      %v525 = vpop.f32.mrb[0].mxu0
      %v526 = vadd.f32 0.0, %v525
      %v527 = vpop.f32.mrb[0].mxu0
      %528 = vdwg.mxu0
      %v529 = vld [vmem:[%s2] sm:$0x1]
      %v531 = vlaneseq
      %v532 = vshrl.u32 %v531, 7
      %v533 = vsub.s32 0, %v532
      %v534 = vrot.slane %v529, %v533
      %v536 = vmul.f32 %v451, %v534
      %v537 = vmul.f32 %v456, %v534
      %v538 = vmul.f32 %v461, %v534
      %v539 = vmul.f32 %v466, %v534
      %v540 = vmul.f32 %v471, %v534
      %v541 = vmul.f32 %v476, %v534
      %v542 = vmul.f32 %v481, %v534
      %v543 = vmul.f32 %v486, %v534
      %v544 = vmul.f32 %v491, %v534
      %v545 = vmul.f32 %v496, %v534
      %v546 = vmul.f32 %v501, %v534
      %v547 = vmul.f32 %v506, %v534
      %v548 = vmul.f32 %v511, %v534
      %v549 = vmul.f32 %v516, %v534
      %v550 = vmul.f32 %v521, %v534
      %v551 = vmul.f32 %v526, %v534
      %v552 = vld [vmem:[%s3] sm:$0x1]
      %v554 = vlaneseq
      %v555 = vshrl.u32 %v554, 7
      %v556 = vsub.s32 0, %v555
      %v557 = vrot.slane %v552, %v556
      %v559 = vadd.f32 %v536, %v557
      %v560 = vadd.f32 %v537, %v557
      %v561 = vadd.f32 %v538, %v557
      %v562 = vadd.f32 %v539, %v557
      %v563 = vadd.f32 %v540, %v557
      %v564 = vadd.f32 %v541, %v557
      %v565 = vadd.f32 %v542, %v557
      %v566 = vadd.f32 %v543, %v557
      %v567 = vadd.f32 %v544, %v557
      %v568 = vadd.f32 %v545, %v557
      %v569 = vadd.f32 %v546, %v557
      %v570 = vadd.f32 %v547, %v557
      %v571 = vadd.f32 %v548, %v557
      %v572 = vadd.f32 %v549, %v557
      %v573 = vadd.f32 %v550, %v557
      %v574 = vadd.f32 %v551, %v557
      %vm575 = vcmp.ge.f32.partialorder %v559, 0.0
      %vm576 = vcmp.ge.f32.partialorder %v560, 0.0
      %vm577 = vcmp.ge.f32.partialorder %v561, 0.0
      %vm578 = vcmp.ge.f32.partialorder %v562, 0.0
      %vm579 = vcmp.ge.f32.partialorder %v563, 0.0
      %vm580 = vcmp.ge.f32.partialorder %v564, 0.0
      %vm581 = vcmp.ge.f32.partialorder %v565, 0.0
      %vm582 = vcmp.ge.f32.partialorder %v566, 0.0
      %vm583 = vcmp.ge.f32.partialorder %v567, 0.0
      %vm584 = vcmp.ge.f32.partialorder %v568, 0.0
      %vm585 = vcmp.ge.f32.partialorder %v569, 0.0
      %vm586 = vcmp.ge.f32.partialorder %v570, 0.0
      %vm587 = vcmp.ge.f32.partialorder %v571, 0.0
      %vm588 = vcmp.ge.f32.partialorder %v572, 0.0
      %vm589 = vcmp.ge.f32.partialorder %v573, 0.0
      %vm590 = vcmp.ge.f32.partialorder %v574, 0.0
      %v591 = vld [vmem:[%s4] sm:$0x1]
      %v593 = vlaneseq
      %v594 = vshrl.u32 %v593, 7
      %v595 = vsub.s32 0, %v594
      %v596 = vrot.slane %v591, %v595
      %v598 = vmul.f32 %v596, %v559
      %v599 = vmul.f32 %v596, %v560
      %v600 = vmul.f32 %v596, %v561
      %v601 = vmul.f32 %v596, %v562
      %v602 = vmul.f32 %v596, %v563
      %v603 = vmul.f32 %v596, %v564
      %v604 = vmul.f32 %v596, %v565
      %v605 = vmul.f32 %v596, %v566
      %v606 = vmul.f32 %v596, %v567
      %v607 = vmul.f32 %v596, %v568
      %v608 = vmul.f32 %v596, %v569
      %v609 = vmul.f32 %v596, %v570
      %v610 = vmul.f32 %v596, %v571
      %v611 = vmul.f32 %v596, %v572
      %v612 = vmul.f32 %v596, %v573
      %v613 = vmul.f32 %v596, %v574
      %v614 = vsel %vm575, %v559, %v598
      %v615 = vsel %vm576, %v560, %v599
      %v616 = vsel %vm577, %v561, %v600
      %v617 = vsel %vm578, %v562, %v601
      %v618 = vsel %vm579, %v563, %v602
      %v619 = vsel %vm580, %v564, %v603
      %v620 = vsel %vm581, %v565, %v604
      %v621 = vsel %vm582, %v566, %v605
      %v622 = vsel %vm583, %v567, %v606
      %v623 = vsel %vm584, %v568, %v607
      %v624 = vsel %vm585, %v569, %v608
      %v625 = vsel %vm586, %v570, %v609
      %v626 = vsel %vm587, %v571, %v610
      %v627 = vsel %vm588, %v572, %v611
      %v628 = vsel %vm589, %v573, %v612
      %v629 = vsel %vm590, %v574, %v613
      %v630 = vpack.c.bf16 %v615, %v614
      %v631 = vpack.c.bf16 %v617, %v616
      %v632 = vpack.c.bf16 %v619, %v618
      %v633 = vpack.c.bf16 %v621, %v620
      %v634 = vpack.c.bf16 %v623, %v622
      %v635 = vpack.c.bf16 %v625, %v624
      %v636 = vpack.c.bf16 %v627, %v626
      %v637 = vpack.c.bf16 %v629, %v628
      %v646 = vunpack.c.l.b16 %v630
      %v647 = vunpack.c.h.b16 %v630
      %v648 = vunpack.c.l.b16 %v631
      %v649 = vunpack.c.h.b16 %v631
      %v650 = vunpack.c.l.b16 %v632
      %v651 = vunpack.c.h.b16 %v632
      %v652 = vunpack.c.l.b16 %v633
      %v653 = vunpack.c.h.b16 %v633
      %v654 = vunpack.c.l.b16 %v634
      %v655 = vunpack.c.h.b16 %v634
      %v656 = vunpack.c.l.b16 %v635
      %v657 = vunpack.c.h.b16 %v635
      %v658 = vunpack.c.l.b16 %v636
      %v659 = vunpack.c.h.b16 %v636
      %v660 = vunpack.c.l.b16 %v637
      %v661 = vunpack.c.h.b16 %v637
      %v662 = vpack.c.b16 %v646, %v646
      %v663 = vpack.c.b16 %v647, %v647
      %v664 = vpack.c.b16 %v648, %v648
      %v665 = vpack.c.b16 %v649, %v649
      %v666 = vpack.c.b16 %v650, %v650
      %v667 = vpack.c.b16 %v651, %v651
      %v668 = vpack.c.b16 %v652, %v652
      %v669 = vpack.c.b16 %v653, %v653
      %v670 = vpack.c.b16 %v654, %v654
      %v671 = vpack.c.b16 %v655, %v655
      %v672 = vpack.c.b16 %v656, %v656
      %v673 = vpack.c.b16 %v657, %v657
      %v674 = vpack.c.b16 %v658, %v658
      %v675 = vpack.c.b16 %v659, %v659
      %v676 = vpack.c.b16 %v660, %v660
      %v677 = vpack.c.b16 %v661, %v661
      %vm694 = vcmask 125952
      %695 = vst.msk [vmem:[%s303] sm:$0xf] %vm694, %v662
      %696 = vst.msk [vmem:[%s303 + $0x4] sm:$0xf] %vm694, %v663
      %697 = vst.msk [vmem:[%s303 + $0x8] sm:$0xf] %vm694, %v664
      %698 = vst.msk [vmem:[%s303 + $0xc] sm:$0xf] %vm694, %v665
      %699 = vst.msk [vmem:[%s303 + $0x10] sm:$0xf] %vm694, %v666
      %700 = vst.msk [vmem:[%s303 + $0x14] sm:$0xf] %vm694, %v667
      %701 = vst.msk [vmem:[%s303 + $0x18] sm:$0xf] %vm694, %v668
      %702 = vst.msk [vmem:[%s303 + $0x1c] sm:$0xf] %vm694, %v669
      %703 = vst.msk [vmem:[%s303 + $0x20] sm:$0xf] %vm694, %v670
      %704 = vst.msk [vmem:[%s303 + $0x24] sm:$0xf] %vm694, %v671
      %705 = vst.msk [vmem:[%s303 + $0x28] sm:$0xf] %vm694, %v672
      %706 = vst.msk [vmem:[%s303 + $0x2c] sm:$0xf] %vm694, %v673
      %707 = vst.msk [vmem:[%s303 + $0x30] sm:$0xf] %vm694, %v674
      %708 = vst.msk [vmem:[%s303 + $0x34] sm:$0xf] %vm694, %v675
      %709 = vst.msk [vmem:[%s303 + $0x38] sm:$0xf] %vm694, %v676
      %710 = vst.msk [vmem:[%s303 + $0x3c] sm:$0xf] %vm694, %v677
      %711 = vrot.lane.b32.xlu0 %v662, 112
      %v712 = vpop.permute.xlu0 %711
      %713 = vrot.lane.b32.xlu0 %v663, 112
      %v714 = vpop.permute.xlu0 %713
      %715 = vrot.lane.b32.xlu0 %v664, 112
      %v716 = vpop.permute.xlu0 %715
      %717 = vrot.lane.b32.xlu0 %v665, 112
      %v718 = vpop.permute.xlu0 %717
      %719 = vrot.lane.b32.xlu0 %v666, 112
      %v720 = vpop.permute.xlu0 %719
      %721 = vrot.lane.b32.xlu0 %v667, 112
      %v722 = vpop.permute.xlu0 %721
      %723 = vrot.lane.b32.xlu0 %v668, 112
      %v724 = vpop.permute.xlu0 %723
      %725 = vrot.lane.b32.xlu0 %v669, 112
      %v726 = vpop.permute.xlu0 %725
      %727 = vrot.lane.b32.xlu0 %v670, 112
      %v728 = vpop.permute.xlu0 %727
      %729 = vrot.lane.b32.xlu0 %v671, 112
      %v730 = vpop.permute.xlu0 %729
      %731 = vrot.lane.b32.xlu0 %v672, 112
      %v732 = vpop.permute.xlu0 %731
      %733 = vrot.lane.b32.xlu0 %v673, 112
      %v734 = vpop.permute.xlu0 %733
      %735 = vrot.lane.b32.xlu0 %v674, 112
      %v736 = vpop.permute.xlu0 %735
      %737 = vrot.lane.b32.xlu0 %v675, 112
      %v738 = vpop.permute.xlu0 %737
      %739 = vrot.lane.b32.xlu0 %v676, 112
      %v740 = vpop.permute.xlu0 %739
      %741 = vrot.lane.b32.xlu0 %v677, 112
      %v742 = vpop.permute.xlu0 %741
      %759 = vst.msk [vmem:[%s313] sm:$0xf] %vm694, %v712
      %760 = vst.msk [vmem:[%s313 + $0x4] sm:$0xf] %vm694, %v714
      %761 = vst.msk [vmem:[%s313 + $0x8] sm:$0xf] %vm694, %v716
      %762 = vst.msk [vmem:[%s313 + $0xc] sm:$0xf] %vm694, %v718
      %763 = vst.msk [vmem:[%s313 + $0x10] sm:$0xf] %vm694, %v720
      %764 = vst.msk [vmem:[%s313 + $0x14] sm:$0xf] %vm694, %v722
      %765 = vst.msk [vmem:[%s313 + $0x18] sm:$0xf] %vm694, %v724
      %766 = vst.msk [vmem:[%s313 + $0x1c] sm:$0xf] %vm694, %v726
      %767 = vst.msk [vmem:[%s313 + $0x20] sm:$0xf] %vm694, %v728
      %768 = vst.msk [vmem:[%s313 + $0x24] sm:$0xf] %vm694, %v730
      %769 = vst.msk [vmem:[%s313 + $0x28] sm:$0xf] %vm694, %v732
      %770 = vst.msk [vmem:[%s313 + $0x2c] sm:$0xf] %vm694, %v734
      %771 = vst.msk [vmem:[%s313 + $0x30] sm:$0xf] %vm694, %v736
      %772 = vst.msk [vmem:[%s313 + $0x34] sm:$0xf] %vm694, %v738
      %773 = vst.msk [vmem:[%s313 + $0x38] sm:$0xf] %vm694, %v740
      %774 = vst.msk [vmem:[%s313 + $0x3c] sm:$0xf] %vm694, %v742
      %s775 = smul.u32 16, %s23
      %p776 = scmp.lt.s32.totalorder %s22, 1
      %s777 = scalar_select %p776, %s22, 1
      %p778 = scmp.lt.s32.totalorder %s775, 31
      %s779 = scalar_select %p778, %s775, 31
      %s780 = smul.addr %s777, 32
      %s781 = sadd.s32 %s779, %s780
      %s782 = smul.addr %s781, 4
      %s783 = scalar_lea.vmem %s5, %s782
      %s784 = smul.u32 16, %s23
      %p785 = scmp.lt.s32.totalorder %s22, 1
      %s786 = scalar_select %p785, %s22, 1
      %p787 = scmp.lt.s32.totalorder %s784, 31
      %s788 = scalar_select %p787, %s784, 31
      %s789 = smul.addr %s786, 32
      %s790 = sadd.s32 %s788, %s789
      %s791 = smul.addr %s790, 4
      %s792 = scalar_lea.vmem %s6, %s791
      // Predicated region
      $region41: #{tpu_custom_call.1} parent=39 // pred_check
        %p793 = pneg %p162
      $region42: #{tpu_custom_call.1} parent=39 // pred_check_branch
        %795 = sbr.rel (%p793) target = $region44
      $region43: #{tpu_custom_call.1} parent=39 // pred_region
        %s796 = smul.u32 16, %s23
      $region44: #{tpu_custom_call.1} parent=39 // pred_fallthru
        _
      // Predicated region
      $region45: #{tpu_custom_call.1} parent=39 // pred_check
        %p797 = pneg %p190
      $region46: #{tpu_custom_call.1} parent=39 // pred_check_branch
        %799 = sbr.rel (%p797) target = $region48
      $region47: #{tpu_custom_call.1} parent=39 // pred_region
        %s800 = smul.u32 16, %s23
      $region48: #{tpu_custom_call.1} parent=39 // pred_fallthru
        _
    $region40: #{tpu_custom_call.1} parent=5 // pred_fallthru
      _
    %p801 = scmp.le.s32.totalorder 2, %s13
    // Predicated region
    $region49: #{tpu_custom_call.1} parent=5 // pred_check
      %p802 = pneg %p801
    $region50: #{tpu_custom_call.1} parent=5 // pred_check_branch
      %804 = sbr.rel (%p802) target = $region52
    $region51: #{tpu_custom_call.1} parent=5 // pred_region
      %s805 = ssub.s32 %s13, 2
      // Predicated region
      $region53: #{tpu_custom_call.1} parent=51 // pred_check
        %p806 = pneg %p168
      $region54: #{tpu_custom_call.1} parent=51 // pred_check_branch
        %808 = sbr.rel (%p806) target = $region56
      $region55: #{tpu_custom_call.1} parent=51 // pred_region
        %s809 = smul.u32 16, %s25
        %p810 = scmp.lt.s32.totalorder %s24, 1
        %s811 = scalar_select %p810, %s24, 1
        %p812 = scmp.lt.s32.totalorder %s809, 31
        %s813 = scalar_select %p812, %s809, 31
        %s814 = smul.addr %s811, 32
        %s815 = sadd.s32 %s813, %s814
        %s816 = smul.addr %s815, 4
        %s817 = scalar_lea.vmem %s5, %s816
      $region56: #{tpu_custom_call.1} parent=51 // pred_fallthru
        _
      // Predicated region
      $region57: #{tpu_custom_call.1} parent=51 // pred_check
        %p818 = pneg %p196
      $region58: #{tpu_custom_call.1} parent=51 // pred_check_branch
        %820 = sbr.rel (%p818) target = $region60
      $region59: #{tpu_custom_call.1} parent=51 // pred_region
        %s821 = smul.u32 16, %s25
        %p822 = scmp.lt.s32.totalorder %s24, 1
        %s823 = scalar_select %p822, %s24, 1
        %p824 = scmp.lt.s32.totalorder %s821, 31
        %s825 = scalar_select %p824, %s821, 31
        %s826 = smul.addr %s823, 32
        %s827 = sadd.s32 %s825, %s826
        %s828 = smul.addr %s827, 4
        %s829 = scalar_lea.vmem %s6, %s828
      $region60: #{tpu_custom_call.1} parent=51 // pred_fallthru
        _
    $region52: #{tpu_custom_call.1} parent=5 // pred_fallthru
      _
  $region6: #{tpu_custom_call.1} parent=0 // loop_footer
    %s17 = sadd.s32 1, %s13
  $region7: #{tpu_custom_call.1} parent=0 // loop_footer_branch
    %12 = sbr.rel target = $region3
  $region8: #{tpu_custom_call.1} parent=0 // loop_exit
    _

</llo_original>
